<compile_context>
chip_gen: v7x
topology: tpu7x:2x2x1
jax: 0.10.0
libtpu: 0.0.40
codegen_flags: <defaults>
</compile_context>

<pallas_src>
import numpy as np
import jax
import jax.numpy as jnp
from jax import lax
from jax.experimental import pallas as pl
from jax.experimental.pallas import tpu as pltpu

MARGIN = 1.0            # nn.TripletMarginLoss(margin=1)
EPS = 1e-6              # PyTorch pairwise_distance eps
DIAG_FILL = 100000.0    # dist_mtx.fill_diagonal_(pos_dist)
CROSS_CROP_FILL = 1e30  # excludes columns from a different crop (f32 only!)
LANE = 128


def _make_kernel(n_true, tile_m, tile_n):
    def kernel(anc_ref, posrow_ref, posT_ref, psq_ref, cid_row_ref, cid_col_ref,
               loss_ref, minred_ref):
        i = pl.program_id(0)           # row (anchor) tile   -- "parallel"
        j = pl.program_id(1)           # column (negative) tile -- "arbitrary"
        nj = pl.num_programs(1)

        @pl.when(j == 0)
        def _init():
            minred_ref[...] = jnp.full((tile_m, 1), CROSS_CROP_FILL, jnp.float32)

        a = anc_ref[...]               # (tile_m, d), native dtype
        a2 = a * (-2.0)                # exact scale; folds the -2 into the small tile

        # Shifted squared distance (no ||a||^2 term): ||p_j||^2 - 2 a_i . p_j
        red = lax.dot_general(a2, posT_ref[...], (((1,), (0,)), ((), ())),
                              preferred_element_type=jnp.float32)   # (tile_m, tile_n)
        red = red + psq_ref[...]

        # Keep only same-crop, off-diagonal columns (one tiny column iota).
        rows = i * tile_m + lax.broadcasted_iota(jnp.int32, (tile_m, 1), 0)
        cols = j * tile_n + lax.broadcasted_iota(jnp.int32, (1, tile_n), 1)
        keep = jnp.logical_and(cid_row_ref[...] == cid_col_ref[...], cols != rows)
        red = jnp.where(keep, red, CROSS_CROP_FILL)

        # Running row-minimum of the shifted distances across column tiles.
        minred_ref[...] = jnp.minimum(minred_ref[...],
                                      jnp.min(red, axis=1, keepdims=True))

        @pl.when(j == nj - 1)
        def _finalize():
            a_f = a.astype(jnp.float32)
            a_sq = jnp.sum(a_f * a_f, axis=1, keepdims=True)          # (tile_m, 1)
            min_off = minred_ref[...] + a_sq     # hardest-negative squared distance

            # Anchor-positive distance (keeps the PyTorch pairwise_distance eps).
            p_tile = posrow_ref[...].astype(jnp.float32)
            d_ap = jnp.sqrt(jnp.sum((a_f - p_tile + EPS) ** 2,
                                    axis=1, keepdims=True))           # (tile_m, 1)

            # If every off-diagonal same-crop distance exceeds the 1e5 diagonal
            # fill (e.g. a single-keypoint crop), PyTorch's argmin selects the
            # diagonal, i.e. neg == pos and d_an == d_ap.
            # TODO(synk): off-diagonal branch drops the O(1e-6) elementwise eps
            # term of TripletMarginLoss (d_an = sqrt(min_d) vs ||a - neg + eps||).
            d_an = jnp.where(min_off > DIAG_FILL, d_ap,
                             jnp.sqrt(jnp.maximum(min_off, 0.0)))

            loss = jnp.maximum(d_ap - d_an + MARGIN, 0.0)             # (tile_m, 1)
            # Zero out padded rows (n_true is a static Python int).
            loss_ref[...] = jnp.where(rows < n_true, loss, 0.0)

    return kernel


def triplet_criterion(anc_feat, pos_feat, crop_ids):
    """Pallas equivalent of TripletCriterion(margin=1, swap=False,
    hn_type='minibatch').forward(anc_feat, pos_feat, kpts_crop_ids).

    anc_feat, pos_feat : (n, d) float features (f32 / bf16, fed at native dtype).
    crop_ids           : (n,) int crop membership per keypoint (expanded
                         kpts_crop_ids counts).
    """
    n, d = anc_feat.shape
    n_pad = ((n + LANE - 1) // LANE) * LANE          # lane-dense negative axis
    tile_m = 128                                     # fits v7x 64-MiB VMEM, feeds 2 TCs
    # Largest column tile (<= 2048 lanes) that divides n_pad: caps the per-step
    # (tile_m, tile_n) slab independently of batch size, no extra padding.
    tile_n = LANE
    for cand in (2048, 1024, 512, 256, 128):
        if n_pad % cand == 0:
            tile_n = cand
            break
    grid = (n_pad // tile_m, n_pad // tile_n)

    pad_r = n_pad - n
    anc_p = jnp.pad(anc_feat, ((0, pad_r), (0, 0)))
    pos_p = jnp.pad(pos_feat, ((0, pad_r), (0, 0)))
    pos_t = pos_p.T                                  # (d, n_pad): canonical [K, N] for MXU
    # Padded keypoints get crop id -1 (never matches a real crop id >= 0).
    cid = jnp.pad(crop_ids.astype(jnp.int32), (0, pad_r), constant_values=-1)
    cid_row = cid.reshape(n_pad, 1)
    cid_col = cid.reshape(1, n_pad)
    # Column squared norms, computed once (padded rows are zero).
    psq = jnp.sum(pos_p.astype(jnp.float32) ** 2, axis=1).reshape(1, n_pad)

    per_row = pl.pallas_call(
        _make_kernel(n, tile_m, tile_n),
        out_shape=jax.ShapeDtypeStruct((n_pad, 1), jnp.float32),
        grid=grid,
        in_specs=[
            pl.BlockSpec((tile_m, d), lambda i, j: (i, 0)),   # anchor rows
            pl.BlockSpec((tile_m, d), lambda i, j: (i, 0)),   # matching pos rows (d_ap)
            pl.BlockSpec((d, tile_n), lambda i, j: (0, j)),   # pos^T column tile
            pl.BlockSpec((1, tile_n), lambda i, j: (0, j)),   # ||pos||^2 column tile
            pl.BlockSpec((tile_m, 1), lambda i, j: (i, 0)),   # row crop ids
            pl.BlockSpec((1, tile_n), lambda i, j: (0, j)),   # col crop ids
        ],
        out_specs=pl.BlockSpec((tile_m, 1), lambda i, j: (i, 0)),
        scratch_shapes=[pltpu.VMEM((tile_m, 1), jnp.float32)],   # running min
        compiler_params=pltpu.CompilerParams(
            dimension_semantics=("parallel", "arbitrary"),
            vmem_limit_bytes=32 << 20),
    )(anc_p, pos_p, pos_t, psq, cid_row, cid_col)

    return jnp.sum(per_row) / n


def ref_triplet_numpy(anc, pos, kpts_crop_ids):
    """Pure numpy reference matching the PyTorch module semantics."""
    anc = np.asarray(anc, dtype=np.float64)
    pos = np.asarray(pos, dtype=np.float64)
    dist = np.sum((anc[:, None, :] - pos[None, :, :]) ** 2, axis=-1)
    np.fill_diagonal(dist, DIAG_FILL)
    neg = []
    r = 0
    for k in kpts_crop_ids:
        blk = dist[r:r + k, r:r + k]
        idx = np.argmin(blk, axis=1)
        neg.append(pos[r:r + k][idx])
        r += k
    neg = np.concatenate(neg, axis=0)
    d_ap = np.sqrt(np.sum((anc - pos + EPS) ** 2, axis=1))
    d_an = np.sqrt(np.sum((anc - neg + EPS) ** 2, axis=1))
    return float(np.mean(np.maximum(d_ap - d_an + MARGIN, 0.0)))


if __name__ == "__main__":
    key = jax.random.PRNGKey(0)
    d = 32
    kpts_crop_ids = [7, 1, 9, 7]   # keypoints per crop, incl. a 1-keypoint crop
    n = sum(kpts_crop_ids)

    k1, k2 = jax.random.split(key)
    anc = jax.random.normal(k1, (n, d), dtype=jnp.float32)
    pos = jax.random.normal(k2, (n, d), dtype=jnp.float32)
    crop_ids = jnp.asarray(
        np.repeat(np.arange(len(kpts_crop_ids)), kpts_crop_ids), jnp.int32)

    out = triplet_criterion(anc, pos, crop_ids)
    out = jax.block_until_ready(out)

    ref = ref_triplet_numpy(np.asarray(anc), np.asarray(pos), kpts_crop_ids)
    assert abs(float(out) - ref) < 1e-3, (float(out), ref)
    print("KERNEL_OK")
</pallas_src>

<mosaic_0001>
module attributes {stable_mosaic.version = 11 : i64} {
  func.func @kernel(%arg0: i32, %arg1: i32, %arg2: memref<128x32xf32, #tpu.memory_space<vmem>>, %arg3: memref<128x32xf32, #tpu.memory_space<vmem>>, %arg4: memref<32x128xf32, #tpu.memory_space<vmem>>, %arg5: memref<1x128xf32, #tpu.memory_space<vmem>>, %arg6: memref<128x1xi32, #tpu.memory_space<vmem>>, %arg7: memref<1x128xi32, #tpu.memory_space<vmem>>, %arg8: memref<128x1xf32, #tpu.memory_space<vmem>>, %arg9: memref<128x1xf32, #tpu.memory_space<vmem>>) attributes {dimension_semantics = [#tpu.dimension_semantics<parallel>, #tpu.dimension_semantics<arbitrary>], iteration_bounds = array<i64: 1, 1>, scalar_prefetch = 0 : i64, scratch_operands = 1 : i64, tpu.core_type = #tpu.core_type<tc>, window_params = [{transform_indices = @transform_0, window_bounds = array<i64: 128, 32>}, {transform_indices = @transform_1, window_bounds = array<i64: 128, 32>}, {transform_indices = @transform_2, window_bounds = array<i64: 32, 128>}, {transform_indices = @transform_3, window_bounds = array<i64: 1, 128>}, {transform_indices = @transform_4, window_bounds = array<i64: 128, 1>}, {transform_indices = @transform_5, window_bounds = array<i64: 1, 128>}, {transform_indices = @transform_6, window_bounds = array<i64: 128, 1>}]} {
    %c0_i32 = arith.constant 0 : i32
    %0 = arith.cmpi eq, %arg1, %c0_i32 : i32
    %1 = arith.extui %0 : i1 to i32
    %c0_i32_0 = arith.constant 0 : i32
    %2 = arith.cmpi ne, %1, %c0_i32_0 : i32
    scf.if %2 {
      %cst_20 = arith.constant 1.000000e+30 : f32
      %38 = vector.broadcast %cst_20 : f32 to vector<128x1xf32>
      %c0_21 = arith.constant 0 : index
      %c0_22 = arith.constant 0 : index
      %39 = vector.load %arg9[%c0_21, %c0_22] : memref<128x1xf32, #tpu.memory_space<vmem>>, vector<128x1xf32>
      tpu.vector_store %arg9[%c0_21, %c0_22], %38 {strides = array<i32>} : memref<128x1xf32, #tpu.memory_space<vmem>>, vector<128x1xf32>,
    } else {
    }
    %c0 = arith.constant 0 : index
    %c0_1 = arith.constant 0 : index
    %3 = vector.load %arg2[%c0, %c0_1] : memref<128x32xf32, #tpu.memory_space<vmem>>, vector<128x32xf32>
    %cst = arith.constant -2.000000e+00 : f32
    %4 = vector.broadcast %cst : f32 to vector<128x32xf32>
    %5 = arith.mulf %3, %4 : vector<128x32xf32>
    %c0_2 = arith.constant 0 : index
    %c0_3 = arith.constant 0 : index
    %6 = vector.load %arg4[%c0_2, %c0_3] : memref<32x128xf32, #tpu.memory_space<vmem>>, vector<32x128xf32>
    %cst_4 = arith.constant dense<0.000000e+00> : vector<128x128xf32>
    %7 = tpu.matmul %5, %6, %cst_4 {dimension_numbers = #tpu.dot_dimension_numbers<[1], [0], [0], [1], [0, 0, 1, 1], [], []>} : vector<128x32xf32>, vector<32x128xf32>, vector<128x128xf32> -> vector<128x128xf32>
    %c0_5 = arith.constant 0 : index
    %c0_6 = arith.constant 0 : index
    %8 = vector.load %arg5[%c0_5, %c0_6] : memref<1x128xf32, #tpu.memory_space<vmem>>, vector<1x128xf32>
    %9 = vector.broadcast %8 : vector<1x128xf32> to vector<128x128xf32>
    %10 = arith.addf %7, %9 : vector<128x128xf32>
    %c128_i32 = arith.constant 128 : i32
    %11 = arith.muli %arg0, %c128_i32 : i32
    %12 = tpu.iota {dimensions = array<i32: 0>} : vector<128x1xi32>
    %13 = vector.broadcast %11 : i32 to vector<128x1xi32>
    %14 = arith.addi %13, %12 : vector<128x1xi32>
    %c128_i32_7 = arith.constant 128 : i32
    %15 = arith.muli %arg1, %c128_i32_7 : i32
    %16 = tpu.iota {dimensions = array<i32: 1>} : vector<1x128xi32>
    %17 = vector.broadcast %15 : i32 to vector<1x128xi32>
    %18 = arith.addi %17, %16 : vector<1x128xi32>
    %c0_8 = arith.constant 0 : index
    %c0_9 = arith.constant 0 : index
    %19 = vector.load %arg6[%c0_8, %c0_9] : memref<128x1xi32, #tpu.memory_space<vmem>>, vector<128x1xi32>
    %c0_10 = arith.constant 0 : index
    %c0_11 = arith.constant 0 : index
    %20 = vector.load %arg7[%c0_10, %c0_11] : memref<1x128xi32, #tpu.memory_space<vmem>>, vector<1x128xi32>
    %21 = vector.broadcast %19 : vector<128x1xi32> to vector<128x128xi32>
    %22 = vector.broadcast %20 : vector<1x128xi32> to vector<128x128xi32>
    %23 = arith.cmpi eq, %21, %22 : vector<128x128xi32>
    %24 = vector.broadcast %18 : vector<1x128xi32> to vector<128x128xi32>
    %25 = vector.broadcast %14 : vector<128x1xi32> to vector<128x128xi32>
    %26 = arith.cmpi ne, %24, %25 : vector<128x128xi32>
    %27 = arith.andi %23, %26 : vector<128x128xi1>
    %cst_12 = arith.constant 1.000000e+30 : f32
    %28 = vector.broadcast %cst_12 : f32 to vector<128x128xf32>
    %29 = arith.select %27, %10, %28 : vector<128x128xi1>, vector<128x128xf32>
    %c0_13 = arith.constant 0 : index
    %c0_14 = arith.constant 0 : index
    %30 = vector.load %arg9[%c0_13, %c0_14] : memref<128x1xf32, #tpu.memory_space<vmem>>, vector<128x1xf32>
    %cst_15 = arith.constant dense<0x7F800000> : vector<128xf32>
    %31 = vector.multi_reduction <minimumf>, %29, %cst_15 [1] : vector<128x128xf32> to vector<128xf32>
    %32 = vector.shape_cast %31 : vector<128xf32> to vector<128x1xf32>
    %33 = arith.minimumf %30, %32 : vector<128x1xf32>
    %c0_16 = arith.constant 0 : index
    %c0_17 = arith.constant 0 : index
    %34 = vector.load %arg9[%c0_16, %c0_17] : memref<128x1xf32, #tpu.memory_space<vmem>>, vector<128x1xf32>
    tpu.vector_store %arg9[%c0_16, %c0_17], %33 {strides = array<i32>} : memref<128x1xf32, #tpu.memory_space<vmem>>, vector<128x1xf32>,
    %c0_i32_18 = arith.constant 0 : i32
    %35 = arith.cmpi eq, %arg1, %c0_i32_18 : i32
    %36 = arith.extui %35 : i1 to i32
    %c0_i32_19 = arith.constant 0 : i32
    %37 = arith.cmpi ne, %36, %c0_i32_19 : i32
    scf.if %37 {
      %38 = arith.mulf %3, %3 : vector<128x32xf32>
      %cst_20 = arith.constant dense<0.000000e+00> : vector<128xf32>
      %39 = vector.multi_reduction <add>, %38, %cst_20 [1] : vector<128x32xf32> to vector<128xf32>
      %40 = vector.shape_cast %39 : vector<128xf32> to vector<128x1xf32>
      %c0_21 = arith.constant 0 : index
      %c0_22 = arith.constant 0 : index
      %41 = vector.load %arg9[%c0_21, %c0_22] : memref<128x1xf32, #tpu.memory_space<vmem>>, vector<128x1xf32>
      %42 = arith.addf %41, %40 : vector<128x1xf32>
      %c0_23 = arith.constant 0 : index
      %c0_24 = arith.constant 0 : index
      %43 = vector.load %arg3[%c0_23, %c0_24] : memref<128x32xf32, #tpu.memory_space<vmem>>, vector<128x32xf32>
      %44 = arith.subf %3, %43 : vector<128x32xf32>
      %cst_25 = arith.constant 9.99999997E-7 : f32
      %45 = vector.broadcast %cst_25 : f32 to vector<128x32xf32>
      %46 = arith.addf %44, %45 : vector<128x32xf32>
      %47 = arith.mulf %46, %46 : vector<128x32xf32>
      %cst_26 = arith.constant dense<0.000000e+00> : vector<128xf32>
      %48 = vector.multi_reduction <add>, %47, %cst_26 [1] : vector<128x32xf32> to vector<128xf32>
      %49 = vector.shape_cast %48 : vector<128xf32> to vector<128x1xf32>
      %50 = math.sqrt %49 : vector<128x1xf32>
      %cst_27 = arith.constant 1.000000e+05 : f32
      %51 = vector.broadcast %cst_27 : f32 to vector<128x1xf32>
      %52 = arith.cmpf ogt, %42, %51 : vector<128x1xf32>
      %cst_28 = arith.constant 0.000000e+00 : f32
      %53 = vector.broadcast %cst_28 : f32 to vector<128x1xf32>
      %54 = arith.maximumf %42, %53 : vector<128x1xf32>
      %55 = math.sqrt %54 : vector<128x1xf32>
      %56 = arith.select %52, %50, %55 : vector<128x1xi1>, vector<128x1xf32>
      %57 = arith.subf %50, %56 : vector<128x1xf32>
      %cst_29 = arith.constant 1.000000e+00 : f32
      %58 = vector.broadcast %cst_29 : f32 to vector<128x1xf32>
      %59 = arith.addf %57, %58 : vector<128x1xf32>
      %cst_30 = arith.constant 0.000000e+00 : f32
      %60 = vector.broadcast %cst_30 : f32 to vector<128x1xf32>
      %61 = arith.maximumf %59, %60 : vector<128x1xf32>
      %c24_i32 = arith.constant 24 : i32
      %62 = vector.broadcast %c24_i32 : i32 to vector<128x1xi32>
      %63 = arith.cmpi slt, %14, %62 : vector<128x1xi32>
      %cst_31 = arith.constant 0.000000e+00 : f32
      %64 = vector.broadcast %cst_31 : f32 to vector<128x1xf32>
      %65 = arith.select %63, %61, %64 : vector<128x1xi1>, vector<128x1xf32>
      %c0_32 = arith.constant 0 : index
      %c0_33 = arith.constant 0 : index
      %66 = vector.load %arg8[%c0_32, %c0_33] : memref<128x1xf32, #tpu.memory_space<vmem>>, vector<128x1xf32>
      tpu.vector_store %arg8[%c0_32, %c0_33], %65 {strides = array<i32>} : memref<128x1xf32, #tpu.memory_space<vmem>>, vector<128x1xf32>,
    } else {
    }
    return
  }
  func.func @transform_0(%arg0: i32, %arg1: i32) -> (i32, i32) {
    %c0_i32 = arith.constant 0 : i32
    %c0_i32_0 = arith.constant 0 : i32
    return %arg0, %c0_i32 : i32, i32
  }
  func.func @transform_1(%arg0: i32, %arg1: i32) -> (i32, i32) {
    %c0_i32 = arith.constant 0 : i32
    %c0_i32_0 = arith.constant 0 : i32
    return %arg0, %c0_i32 : i32, i32
  }
  func.func @transform_2(%arg0: i32, %arg1: i32) -> (i32, i32) {
    %c0_i32 = arith.constant 0 : i32
    %c0_i32_0 = arith.constant 0 : i32
    return %c0_i32, %arg1 : i32, i32
  }
  func.func @transform_3(%arg0: i32, %arg1: i32) -> (i32, i32) {
    %c0_i32 = arith.constant 0 : i32
    %c0_i32_0 = arith.constant 0 : i32
    return %c0_i32, %arg1 : i32, i32
  }
  func.func @transform_4(%arg0: i32, %arg1: i32) -> (i32, i32) {
    %c0_i32 = arith.constant 0 : i32
    %c0_i32_0 = arith.constant 0 : i32
    return %arg0, %c0_i32 : i32, i32
  }
  func.func @transform_5(%arg0: i32, %arg1: i32) -> (i32, i32) {
    %c0_i32 = arith.constant 0 : i32
    %c0_i32_0 = arith.constant 0 : i32
    return %c0_i32, %arg1 : i32, i32
  }
  func.func @transform_6(%arg0: i32, %arg1: i32) -> (i32, i32) {
    %c0_i32 = arith.constant 0 : i32
    %c0_i32_0 = arith.constant 0 : i32
    return %arg0, %c0_i32 : i32, i32
  }
}

</mosaic_0001>

<llo_original>
// kernel: tpu_custom_call.1
$region0: #{tpu_custom_call.1}
  #allocation0 [shape = 'u32[]', space=smem, size = 0x4, offset = 0x4, fixed_abs, tag = 'smem constant byte address 0x4 - core index']
  #allocation1 [shape = 'u32[144,128]{1,0:T(1,128)}', space=vmem, size = 0x12000, scoped, tag = 'internal scratch']
  #allocation2 [shape = 'f32[128,1]{1,0:T(8,128)}', space=vmem, size = 0x10000, scoped, tag = 'scratch operand']
  %s0 = inlined_call_operand.vmem [shape: f32[128,32], index: 0, kind: input, shape index: {}]
  %s1 = inlined_call_operand.vmem [shape: f32[128,32], index: 1, kind: input, shape index: {}]
  %s2 = inlined_call_operand.vmem [shape: f32[32,128], index: 2, kind: input, shape index: {}]
  %s3 = inlined_call_operand.vmem [shape: f32[1,128], index: 3, kind: input, shape index: {}]
  %s4 = inlined_call_operand.vmem [shape: s32[128,1], index: 4, kind: input, shape index: {}]
  %s5 = inlined_call_operand.vmem [shape: s32[1,128], index: 5, kind: input, shape index: {}]
  %s6 = inlined_call_operand.vmem [shape: f32[128,1], index: 6, kind: output, shape index: {}]
  %s7 = sld [smem:[#allocation0]]
  $region42: #{tpu_custom_call.1} parent=0
    _
  %s9 = ssub.s32 1, %s7
  %s10 = scalar_select 0, %s9, %s7
  // Predicated region
  $region2: #{tpu_custom_call.1} parent=0 // pred_check
    _
  $region3: #{tpu_custom_call.1} parent=0 // pred_check_branch
    %12 = sbr.rel (0) target = $region5
  $region4: #{tpu_custom_call.1} parent=0 // pred_region
    _
  $region5: #{tpu_custom_call.1} parent=0 // pred_fallthru
    _
  // Predicated region
  $region6: #{tpu_custom_call.1} parent=0 // pred_check
    _
  $region7: #{tpu_custom_call.1} parent=0 // pred_check_branch
    %14 = sbr.rel (0) target = $region9
  $region8: #{tpu_custom_call.1} parent=0 // pred_region
    _
  $region9: #{tpu_custom_call.1} parent=0 // pred_fallthru
    _
  // Predicated region
  $region10: #{tpu_custom_call.1} parent=0 // pred_check
    _
  $region11: #{tpu_custom_call.1} parent=0 // pred_check_branch
    %16 = sbr.rel (0) target = $region13
  $region12: #{tpu_custom_call.1} parent=0 // pred_region
    _
  $region13: #{tpu_custom_call.1} parent=0 // pred_fallthru
    _
  // Predicated region
  $region14: #{tpu_custom_call.1} parent=0 // pred_check
    _
  $region15: #{tpu_custom_call.1} parent=0 // pred_check_branch
    %18 = sbr.rel (0) target = $region17
  $region16: #{tpu_custom_call.1} parent=0 // pred_region
    _
  $region17: #{tpu_custom_call.1} parent=0 // pred_fallthru
    _
  // Predicated region
  $region18: #{tpu_custom_call.1} parent=0 // pred_check
    _
  $region19: #{tpu_custom_call.1} parent=0 // pred_check_branch
    %20 = sbr.rel (0) target = $region21
  $region20: #{tpu_custom_call.1} parent=0 // pred_region
    _
  $region21: #{tpu_custom_call.1} parent=0 // pred_fallthru
    _
  // Predicated region
  $region22: #{tpu_custom_call.1} parent=0 // pred_check
    _
  $region23: #{tpu_custom_call.1} parent=0 // pred_check_branch
    %22 = sbr.rel (0) target = $region25
  $region24: #{tpu_custom_call.1} parent=0 // pred_region
    _
  $region25: #{tpu_custom_call.1} parent=0 // pred_fallthru
    _
  %p23 = scmp.eq.s32.totalorder 0, 0
  // Predicated region
  $region26: #{tpu_custom_call.1} parent=0 // pred_check
    %p24 = pneg %p23
  $region27: #{tpu_custom_call.1} parent=0 // pred_check_branch
    %26 = sbr.rel (%p24) target = $region29
  $region28: #{tpu_custom_call.1} parent=0 // pred_region
    %vm27 = vcmask 7168
    %28 = vst.msk [vmem:[#allocation2] sm:$0xff] %vm27, 1e+30
    %29 = vst.msk [vmem:[#allocation2 + $0x8] sm:$0xff] %vm27, 1e+30
    %30 = vst.msk [vmem:[#allocation2 + $0x10] sm:$0xff] %vm27, 1e+30
    %31 = vst.msk [vmem:[#allocation2 + $0x18] sm:$0xff] %vm27, 1e+30
    %32 = vst.msk [vmem:[#allocation2 + $0x20] sm:$0xff] %vm27, 1e+30
    %33 = vst.msk [vmem:[#allocation2 + $0x28] sm:$0xff] %vm27, 1e+30
    %34 = vst.msk [vmem:[#allocation2 + $0x30] sm:$0xff] %vm27, 1e+30
    %35 = vst.msk [vmem:[#allocation2 + $0x38] sm:$0xff] %vm27, 1e+30
    %36 = vst.msk [vmem:[#allocation2 + $0x40] sm:$0xff] %vm27, 1e+30
    %37 = vst.msk [vmem:[#allocation2 + $0x48] sm:$0xff] %vm27, 1e+30
    %38 = vst.msk [vmem:[#allocation2 + $0x50] sm:$0xff] %vm27, 1e+30
    %39 = vst.msk [vmem:[#allocation2 + $0x58] sm:$0xff] %vm27, 1e+30
    %40 = vst.msk [vmem:[#allocation2 + $0x60] sm:$0xff] %vm27, 1e+30
    %41 = vst.msk [vmem:[#allocation2 + $0x68] sm:$0xff] %vm27, 1e+30
    %42 = vst.msk [vmem:[#allocation2 + $0x70] sm:$0xff] %vm27, 1e+30
    %43 = vst.msk [vmem:[#allocation2 + $0x78] sm:$0xff] %vm27, 1e+30
  $region29: #{tpu_custom_call.1} parent=0 // pred_fallthru
    _
  %v44 = vld [vmem:[%s0] sm:$0xff]
  %v45 = vld [vmem:[%s0 + $0x8] sm:$0xff]
  %v46 = vld [vmem:[%s0 + $0x10] sm:$0xff]
  %v47 = vld [vmem:[%s0 + $0x18] sm:$0xff]
  %v48 = vld [vmem:[%s0 + $0x20] sm:$0xff]
  %v49 = vld [vmem:[%s0 + $0x28] sm:$0xff]
  %v50 = vld [vmem:[%s0 + $0x30] sm:$0xff]
  %v51 = vld [vmem:[%s0 + $0x38] sm:$0xff]
  %v52 = vld [vmem:[%s0 + $0x40] sm:$0xff]
  %v53 = vld [vmem:[%s0 + $0x48] sm:$0xff]
  %v54 = vld [vmem:[%s0 + $0x50] sm:$0xff]
  %v55 = vld [vmem:[%s0 + $0x58] sm:$0xff]
  %v56 = vld [vmem:[%s0 + $0x60] sm:$0xff]
  %v57 = vld [vmem:[%s0 + $0x68] sm:$0xff]
  %v58 = vld [vmem:[%s0 + $0x70] sm:$0xff]
  %v59 = vld [vmem:[%s0 + $0x78] sm:$0xff]
  %v60 = vmul.f32 %v44, -2.0
  %v61 = vmul.f32 %v45, -2.0
  %v62 = vmul.f32 %v46, -2.0
  %v63 = vmul.f32 %v47, -2.0
  %v64 = vmul.f32 %v48, -2.0
  %v65 = vmul.f32 %v49, -2.0
  %v66 = vmul.f32 %v50, -2.0
  %v67 = vmul.f32 %v51, -2.0
  %v68 = vmul.f32 %v52, -2.0
  %v69 = vmul.f32 %v53, -2.0
  %v70 = vmul.f32 %v54, -2.0
  %v71 = vmul.f32 %v55, -2.0
  %v72 = vmul.f32 %v56, -2.0
  %v73 = vmul.f32 %v57, -2.0
  %v74 = vmul.f32 %v58, -2.0
  %v75 = vmul.f32 %v59, -2.0
  %v76 = vld [vmem:[%s2] sm:$0xff]
  %v77 = vld [vmem:[%s2 + $0x8] sm:$0xff]
  %v78 = vld [vmem:[%s2 + $0x10] sm:$0xff]
  %v79 = vld [vmem:[%s2 + $0x18] sm:$0xff]
  %v80 = vld [vmem:[%s3] sm:$0x1]
  %v82 = vlaneseq
  %v83 = vshrl.u32 %v82, 7
  %v84 = vsub.s32 0, %v83
  %v85 = vrot.slane %v80, %v84
  %vm87 = vcmask 261120
  %v89 = vsel %vm87, %v60, 0
  %v92 = vsel %vm87, %v61, 0
  %v95 = vsel %vm87, %v62, 0
  %v98 = vsel %vm87, %v63, 0
  %v101 = vsel %vm87, %v64, 0
  %v104 = vsel %vm87, %v65, 0
  %v107 = vsel %vm87, %v66, 0
  %v110 = vsel %vm87, %v67, 0
  %v113 = vsel %vm87, %v68, 0
  %v116 = vsel %vm87, %v69, 0
  %v119 = vsel %vm87, %v70, 0
  %v122 = vsel %vm87, %v71, 0
  %v125 = vsel %vm87, %v72, 0
  %v128 = vsel %vm87, %v73, 0
  %v131 = vsel %vm87, %v74, 0
  %v134 = vsel %vm87, %v75, 0
  %136 = vmatprep.subr.mxu0 0.0
  %137 = vmatpush1.msra.mxu0 %v76
  %138 = vmatprep.subr.mxu0 0.0
  %139 = vmatpush1.msra.mxu0 %v77
  %140 = vmatprep.subr.mxu0 0.0
  %141 = vmatpush1.msra.mxu0 %v78
  %142 = vmatprep.subr.mxu0 0.0
  %143 = vmatpush1.msra.mxu0 %v79
  %144 = vmatprep.subr.mxu0 0.0
  %145 = vmatpush1.msra.mxu0 0.0
  %146 = vmatprep.subr.mxu0 0.0
  %147 = vmatpush1.msra.mxu0 0.0
  %148 = vmatprep.subr.mxu0 0.0
  %149 = vmatpush1.msra.mxu0 0.0
  %150 = vmatprep.subr.mxu0 0.0
  %151 = vmatpush1.msra.mxu0 0.0
  %152 = vmatprep.subr.mxu0 0.0
  %153 = vmatpush1.msra.mxu0 0.0
  %154 = vmatprep.subr.mxu0 0.0
  %155 = vmatpush1.msra.mxu0 0.0
  %156 = vmatprep.subr.mxu0 0.0
  %157 = vmatpush1.msra.mxu0 0.0
  %158 = vmatprep.subr.mxu0 0.0
  %159 = vmatpush1.msra.mxu0 0.0
  %160 = vmatprep.subr.mxu0 0.0
  %161 = vmatpush1.msra.mxu0 0.0
  %162 = vmatprep.subr.mxu0 0.0
  %163 = vmatpush1.msra.mxu0 0.0
  %164 = vmatprep.subr.mxu0 0.0
  %165 = vmatpush1.msra.mxu0 0.0
  %166 = vmatprep.subr.mxu0 0.0
  %167 = vmatpush1.msra.mxu0 0.0
  %168 = vmatprep.subr.mxu0 0.0
  %169 = vmatpush1.msra.mxu0 0.0
  %170 = vmatprep.subr.mxu0 0.0
  %171 = vmatpush1.msra.mxu0 0.0
  %172 = vmatprep.subr.mxu0 0.0
  %173 = vmatpush1.msra.mxu0 0.0
  %174 = vmatprep.subr.mxu0 0.0
  %175 = vmatpush1.msra.mxu0 0.0
  %176 = vmatprep.subr.mxu0 0.0
  %177 = vmatpush1.msra.mxu0 0.0
  %178 = vmatprep.subr.mxu0 0.0
  %179 = vmatpush1.msra.mxu0 0.0
  %180 = vmatprep.subr.mxu0 0.0
  %181 = vmatpush1.msra.mxu0 0.0
  %182 = vmatprep.subr.mxu0 0.0
  %183 = vmatpush1.msra.mxu0 0.0
  %184 = vmatprep.subr.mxu0 0.0
  %185 = vmatpush1.msra.mxu0 0.0
  %186 = vmatprep.subr.mxu0 0.0
  %187 = vmatpush1.msra.mxu0 0.0
  %188 = vmatprep.subr.mxu0 0.0
  %189 = vmatpush1.msra.mxu0 0.0
  %190 = vmatprep.subr.mxu0 0.0
  %191 = vmatpush1.msra.mxu0 0.0
  %192 = vmatprep.subr.mxu0 0.0
  %193 = vmatpush1.msra.mxu0 0.0
  %194 = vmatprep.subr.mxu0 0.0
  %195 = vmatpush1.msra.mxu0 0.0
  %196 = vmatprep.subr.mxu0 0.0
  %197 = vmatpush1.msra.mxu0 0.0
  %198 = vmatprep.subr.mxu0 0.0
  %199 = vmatpush1.msra.mxu0 0.0
  %200 = vmatprep.mubr.f32.mxu0 0.0
  %201 = vmatmul.mubr.f32.gmra.mrb[0].mxu0 %v89
  %v202 = vpop.f32.mrb[0].mxu0
  %v203 = vadd.f32 %v85, %v202
  %v204 = vpop.f32.mrb[0].mxu0
  %205 = vmatprep.mubr.f32.mxu0 0.0
  %206 = vmatmul.mubr.f32.gmra.mrb[0].mxu0 %v92
  %v207 = vpop.f32.mrb[0].mxu0
  %v208 = vadd.f32 %v85, %v207
  %v209 = vpop.f32.mrb[0].mxu0
  %210 = vmatprep.mubr.f32.mxu0 0.0
  %211 = vmatmul.mubr.f32.gmra.mrb[0].mxu0 %v95
  %v212 = vpop.f32.mrb[0].mxu0
  %v213 = vadd.f32 %v85, %v212
  %v214 = vpop.f32.mrb[0].mxu0
  %215 = vmatprep.mubr.f32.mxu0 0.0
  %216 = vmatmul.mubr.f32.gmra.mrb[0].mxu0 %v98
  %v217 = vpop.f32.mrb[0].mxu0
  %v218 = vadd.f32 %v85, %v217
  %v219 = vpop.f32.mrb[0].mxu0
  %220 = vmatprep.mubr.f32.mxu0 0.0
  %221 = vmatmul.mubr.f32.gmra.mrb[0].mxu0 %v101
  %v222 = vpop.f32.mrb[0].mxu0
  %v223 = vadd.f32 %v85, %v222
  %v224 = vpop.f32.mrb[0].mxu0
  %225 = vmatprep.mubr.f32.mxu0 0.0
  %226 = vmatmul.mubr.f32.gmra.mrb[0].mxu0 %v104
  %v227 = vpop.f32.mrb[0].mxu0
  %v228 = vadd.f32 %v85, %v227
  %v229 = vpop.f32.mrb[0].mxu0
  %230 = vmatprep.mubr.f32.mxu0 0.0
  %231 = vmatmul.mubr.f32.gmra.mrb[0].mxu0 %v107
  %v232 = vpop.f32.mrb[0].mxu0
  %v233 = vadd.f32 %v85, %v232
  %v234 = vpop.f32.mrb[0].mxu0
  %235 = vmatprep.mubr.f32.mxu0 0.0
  %236 = vmatmul.mubr.f32.gmra.mrb[0].mxu0 %v110
  %v237 = vpop.f32.mrb[0].mxu0
  %v238 = vadd.f32 %v85, %v237
  %v239 = vpop.f32.mrb[0].mxu0
  %240 = vmatprep.mubr.f32.mxu0 0.0
  %241 = vmatmul.mubr.f32.gmra.mrb[0].mxu0 %v113
  %v242 = vpop.f32.mrb[0].mxu0
  %v243 = vadd.f32 %v85, %v242
  %v244 = vpop.f32.mrb[0].mxu0
  %245 = vmatprep.mubr.f32.mxu0 0.0
  %246 = vmatmul.mubr.f32.gmra.mrb[0].mxu0 %v116
  %v247 = vpop.f32.mrb[0].mxu0
  %v248 = vadd.f32 %v85, %v247
  %v249 = vpop.f32.mrb[0].mxu0
  %250 = vmatprep.mubr.f32.mxu0 0.0
  %251 = vmatmul.mubr.f32.gmra.mrb[0].mxu0 %v119
  %v252 = vpop.f32.mrb[0].mxu0
  %v253 = vadd.f32 %v85, %v252
  %v254 = vpop.f32.mrb[0].mxu0
  %255 = vmatprep.mubr.f32.mxu0 0.0
  %256 = vmatmul.mubr.f32.gmra.mrb[0].mxu0 %v122
  %v257 = vpop.f32.mrb[0].mxu0
  %v258 = vadd.f32 %v85, %v257
  %v259 = vpop.f32.mrb[0].mxu0
  %260 = vmatprep.mubr.f32.mxu0 0.0
  %261 = vmatmul.mubr.f32.gmra.mrb[0].mxu0 %v125
  %v262 = vpop.f32.mrb[0].mxu0
  %v263 = vadd.f32 %v85, %v262
  %v264 = vpop.f32.mrb[0].mxu0
  %265 = vmatprep.mubr.f32.mxu0 0.0
  %266 = vmatmul.mubr.f32.gmra.mrb[0].mxu0 %v128
  %v267 = vpop.f32.mrb[0].mxu0
  %v268 = vadd.f32 %v85, %v267
  %v269 = vpop.f32.mrb[0].mxu0
  %270 = vmatprep.mubr.f32.mxu0 0.0
  %271 = vmatmul.mubr.f32.gmra.mrb[0].mxu0 %v131
  %v272 = vpop.f32.mrb[0].mxu0
  %v273 = vadd.f32 %v85, %v272
  %v274 = vpop.f32.mrb[0].mxu0
  %275 = vmatprep.mubr.f32.mxu0 0.0
  %276 = vmatmul.mubr.f32.gmra.mrb[0].mxu0 %v134
  %v277 = vpop.f32.mrb[0].mxu0
  %v278 = vadd.f32 %v85, %v277
  %v279 = vpop.f32.mrb[0].mxu0
  %280 = vdwg.mxu0
  %s281 = smul.u32 0, 128
  %v282 = vlaneseq
  %v283 = vshrl.u32 %v282, 7
  %v284 = vadd.s32 %v283, 8
  %v285 = vadd.s32 %v283, 16
  %v286 = vadd.s32 %v283, 24
  %v287 = vadd.s32 %v283, 32
  %v288 = vadd.s32 %v283, 40
  %v289 = vadd.s32 %v283, 48
  %v290 = vadd.s32 %v283, 56
  %v291 = vadd.s32 %v283, 64
  %v292 = vadd.s32 %v283, 72
  %v293 = vadd.s32 %v283, 80
  %v294 = vadd.s32 %v283, 88
  %v295 = vadd.s32 %v283, 96
  %v296 = vadd.s32 %v283, 104
  %v297 = vadd.s32 %v283, 112
  %v298 = vadd.s32 %v283, 120
  %v299 = vstv %s281
  %v300 = vadd.s32 %v299, %v283
  %v301 = vadd.s32 %v299, %v284
  %v302 = vadd.s32 %v299, %v285
  %v303 = vadd.s32 %v299, %v286
  %v304 = vadd.s32 %v299, %v287
  %v305 = vadd.s32 %v299, %v288
  %v306 = vadd.s32 %v299, %v289
  %v307 = vadd.s32 %v299, %v290
  %v308 = vadd.s32 %v299, %v291
  %v309 = vadd.s32 %v299, %v292
  %v310 = vadd.s32 %v299, %v293
  %v311 = vadd.s32 %v299, %v294
  %v312 = vadd.s32 %v299, %v295
  %v313 = vadd.s32 %v299, %v296
  %v314 = vadd.s32 %v299, %v297
  %v315 = vadd.s32 %v299, %v298
  %s316 = smul.u32 0, 128
  %v317 = vlaneseq
  %v318 = vand.u32 %v317, 127
  %v319 = vstv %s316
  %v320 = vadd.s32 %v319, %v318
  %v321 = vld [vmem:[%s4] sm:$0xff]
  %v322 = vld [vmem:[%s4 + $0x8] sm:$0xff]
  %v323 = vld [vmem:[%s4 + $0x10] sm:$0xff]
  %v324 = vld [vmem:[%s4 + $0x18] sm:$0xff]
  %v325 = vld [vmem:[%s4 + $0x20] sm:$0xff]
  %v326 = vld [vmem:[%s4 + $0x28] sm:$0xff]
  %v327 = vld [vmem:[%s4 + $0x30] sm:$0xff]
  %v328 = vld [vmem:[%s4 + $0x38] sm:$0xff]
  %v329 = vld [vmem:[%s4 + $0x40] sm:$0xff]
  %v330 = vld [vmem:[%s4 + $0x48] sm:$0xff]
  %v331 = vld [vmem:[%s4 + $0x50] sm:$0xff]
  %v332 = vld [vmem:[%s4 + $0x58] sm:$0xff]
  %v333 = vld [vmem:[%s4 + $0x60] sm:$0xff]
  %v334 = vld [vmem:[%s4 + $0x68] sm:$0xff]
  %v335 = vld [vmem:[%s4 + $0x70] sm:$0xff]
  %v336 = vld [vmem:[%s4 + $0x78] sm:$0xff]
  %v337 = vld [vmem:[%s5] sm:$0x1]
  %338 = vset.pattern.permute.xlu0 0
  %339 = vperm.xlu0 %338, %v321
  %v340 = vpop.permute.xlu0 %339
  %341 = vset.pattern.permute.xlu0 0
  %342 = vperm.xlu0 %341, %v322
  %v343 = vpop.permute.xlu0 %342
  %344 = vset.pattern.permute.xlu0 0
  %345 = vperm.xlu0 %344, %v323
  %v346 = vpop.permute.xlu0 %345
  %347 = vset.pattern.permute.xlu0 0
  %348 = vperm.xlu0 %347, %v324
  %v349 = vpop.permute.xlu0 %348
  %350 = vset.pattern.permute.xlu0 0
  %351 = vperm.xlu0 %350, %v325
  %v352 = vpop.permute.xlu0 %351
  %353 = vset.pattern.permute.xlu0 0
  %354 = vperm.xlu0 %353, %v326
  %v355 = vpop.permute.xlu0 %354
  %356 = vset.pattern.permute.xlu0 0
  %357 = vperm.xlu0 %356, %v327
  %v358 = vpop.permute.xlu0 %357
  %359 = vset.pattern.permute.xlu0 0
  %360 = vperm.xlu0 %359, %v328
  %v361 = vpop.permute.xlu0 %360
  %362 = vset.pattern.permute.xlu0 0
  %363 = vperm.xlu0 %362, %v329
  %v364 = vpop.permute.xlu0 %363
  %365 = vset.pattern.permute.xlu0 0
  %366 = vperm.xlu0 %365, %v330
  %v367 = vpop.permute.xlu0 %366
  %368 = vset.pattern.permute.xlu0 0
  %369 = vperm.xlu0 %368, %v331
  %v370 = vpop.permute.xlu0 %369
  %371 = vset.pattern.permute.xlu0 0
  %372 = vperm.xlu0 %371, %v332
  %v373 = vpop.permute.xlu0 %372
  %374 = vset.pattern.permute.xlu0 0
  %375 = vperm.xlu0 %374, %v333
  %v376 = vpop.permute.xlu0 %375
  %377 = vset.pattern.permute.xlu0 0
  %378 = vperm.xlu0 %377, %v334
  %v379 = vpop.permute.xlu0 %378
  %380 = vset.pattern.permute.xlu0 0
  %381 = vperm.xlu0 %380, %v335
  %v382 = vpop.permute.xlu0 %381
  %383 = vset.pattern.permute.xlu0 0
  %384 = vperm.xlu0 %383, %v336
  %v385 = vpop.permute.xlu0 %384
  %v386 = vlaneseq
  %v387 = vshrl.u32 %v386, 7
  %v388 = vsub.s32 0, %v387
  %v389 = vrot.slane %v337, %v388
  %vm390 = vcmp.eq.s32.totalorder %v340, %v389
  %vm391 = vcmp.eq.s32.totalorder %v343, %v389
  %vm392 = vcmp.eq.s32.totalorder %v346, %v389
  %vm393 = vcmp.eq.s32.totalorder %v349, %v389
  %vm394 = vcmp.eq.s32.totalorder %v352, %v389
  %vm395 = vcmp.eq.s32.totalorder %v355, %v389
  %vm396 = vcmp.eq.s32.totalorder %v358, %v389
  %vm397 = vcmp.eq.s32.totalorder %v361, %v389
  %vm398 = vcmp.eq.s32.totalorder %v364, %v389
  %vm399 = vcmp.eq.s32.totalorder %v367, %v389
  %vm400 = vcmp.eq.s32.totalorder %v370, %v389
  %vm401 = vcmp.eq.s32.totalorder %v373, %v389
  %vm402 = vcmp.eq.s32.totalorder %v376, %v389
  %vm403 = vcmp.eq.s32.totalorder %v379, %v389
  %vm404 = vcmp.eq.s32.totalorder %v382, %v389
  %vm405 = vcmp.eq.s32.totalorder %v385, %v389
  %vm406 = vcmp.ne.s32.totalorder %v320, %v300
  %vm407 = vcmp.ne.s32.totalorder %v320, %v301
  %vm408 = vcmp.ne.s32.totalorder %v320, %v302
  %vm409 = vcmp.ne.s32.totalorder %v320, %v303
  %vm410 = vcmp.ne.s32.totalorder %v320, %v304
  %vm411 = vcmp.ne.s32.totalorder %v320, %v305
  %vm412 = vcmp.ne.s32.totalorder %v320, %v306
  %vm413 = vcmp.ne.s32.totalorder %v320, %v307
  %vm414 = vcmp.ne.s32.totalorder %v320, %v308
  %vm415 = vcmp.ne.s32.totalorder %v320, %v309
  %vm416 = vcmp.ne.s32.totalorder %v320, %v310
  %vm417 = vcmp.ne.s32.totalorder %v320, %v311
  %vm418 = vcmp.ne.s32.totalorder %v320, %v312
  %vm419 = vcmp.ne.s32.totalorder %v320, %v313
  %vm420 = vcmp.ne.s32.totalorder %v320, %v314
  %vm421 = vcmp.ne.s32.totalorder %v320, %v315
  %vm422 = vmand %vm390, %vm406
  %vm423 = vmand %vm391, %vm407
  %vm424 = vmand %vm392, %vm408
  %vm425 = vmand %vm393, %vm409
  %vm426 = vmand %vm394, %vm410
  %vm427 = vmand %vm395, %vm411
  %vm428 = vmand %vm396, %vm412
  %vm429 = vmand %vm397, %vm413
  %vm430 = vmand %vm398, %vm414
  %vm431 = vmand %vm399, %vm415
  %vm432 = vmand %vm400, %vm416
  %vm433 = vmand %vm401, %vm417
  %vm434 = vmand %vm402, %vm418
  %vm435 = vmand %vm403, %vm419
  %vm436 = vmand %vm404, %vm420
  %vm437 = vmand %vm405, %vm421
  %v438 = vsel %vm422, %v203, 1e+30
  %v439 = vsel %vm423, %v208, 1e+30
  %v440 = vsel %vm424, %v213, 1e+30
  %v441 = vsel %vm425, %v218, 1e+30
  %v442 = vsel %vm426, %v223, 1e+30
  %v443 = vsel %vm427, %v228, 1e+30
  %v444 = vsel %vm428, %v233, 1e+30
  %v445 = vsel %vm429, %v238, 1e+30
  %v446 = vsel %vm430, %v243, 1e+30
  %v447 = vsel %vm431, %v248, 1e+30
  %v448 = vsel %vm432, %v253, 1e+30
  %v449 = vsel %vm433, %v258, 1e+30
  %v450 = vsel %vm434, %v263, 1e+30
  %v451 = vsel %vm435, %v268, 1e+30
  %v452 = vsel %vm436, %v273, 1e+30
  %v453 = vsel %vm437, %v278, 1e+30
  %v454 = vld [vmem:[#allocation2] sm:$0xff]
  %v455 = vld [vmem:[#allocation2 + $0x8] sm:$0xff]
  %v456 = vld [vmem:[#allocation2 + $0x10] sm:$0xff]
  %v457 = vld [vmem:[#allocation2 + $0x18] sm:$0xff]
  %v458 = vld [vmem:[#allocation2 + $0x20] sm:$0xff]
  %v459 = vld [vmem:[#allocation2 + $0x28] sm:$0xff]
  %v460 = vld [vmem:[#allocation2 + $0x30] sm:$0xff]
  %v461 = vld [vmem:[#allocation2 + $0x38] sm:$0xff]
  %v462 = vld [vmem:[#allocation2 + $0x40] sm:$0xff]
  %v463 = vld [vmem:[#allocation2 + $0x48] sm:$0xff]
  %v464 = vld [vmem:[#allocation2 + $0x50] sm:$0xff]
  %v465 = vld [vmem:[#allocation2 + $0x58] sm:$0xff]
  %v466 = vld [vmem:[#allocation2 + $0x60] sm:$0xff]
  %v467 = vld [vmem:[#allocation2 + $0x68] sm:$0xff]
  %v468 = vld [vmem:[#allocation2 + $0x70] sm:$0xff]
  %v469 = vld [vmem:[#allocation2 + $0x78] sm:$0xff]
  %470 = vmin.xlane.f32.xlu0 %v438
  %v471 = vpop.xlane.xlu0 %470
  %472 = vmin.xlane.f32.xlu0 %v439
  %v473 = vpop.xlane.xlu0 %472
  %474 = vmin.xlane.f32.xlu0 %v440
  %v475 = vpop.xlane.xlu0 %474
  %476 = vmin.xlane.f32.xlu0 %v441
  %v477 = vpop.xlane.xlu0 %476
  %478 = vmin.xlane.f32.xlu0 %v442
  %v479 = vpop.xlane.xlu0 %478
  %480 = vmin.xlane.f32.xlu0 %v443
  %v481 = vpop.xlane.xlu0 %480
  %482 = vmin.xlane.f32.xlu0 %v444
  %v483 = vpop.xlane.xlu0 %482
  %484 = vmin.xlane.f32.xlu0 %v445
  %v485 = vpop.xlane.xlu0 %484
  %486 = vmin.xlane.f32.xlu0 %v446
  %v487 = vpop.xlane.xlu0 %486
  %488 = vmin.xlane.f32.xlu0 %v447
  %v489 = vpop.xlane.xlu0 %488
  %490 = vmin.xlane.f32.xlu0 %v448
  %v491 = vpop.xlane.xlu0 %490
  %492 = vmin.xlane.f32.xlu0 %v449
  %v493 = vpop.xlane.xlu0 %492
  %494 = vmin.xlane.f32.xlu0 %v450
  %v495 = vpop.xlane.xlu0 %494
  %496 = vmin.xlane.f32.xlu0 %v451
  %v497 = vpop.xlane.xlu0 %496
  %498 = vmin.xlane.f32.xlu0 %v452
  %v499 = vpop.xlane.xlu0 %498
  %500 = vmin.xlane.f32.xlu0 %v453
  %v501 = vpop.xlane.xlu0 %500
  %v502 = vmin.f32 %v454, %v471
  %v503 = vmin.f32 %v455, %v473
  %v504 = vmin.f32 %v456, %v475
  %v505 = vmin.f32 %v457, %v477
  %v506 = vmin.f32 %v458, %v479
  %v507 = vmin.f32 %v459, %v481
  %v508 = vmin.f32 %v460, %v483
  %v509 = vmin.f32 %v461, %v485
  %v510 = vmin.f32 %v462, %v487
  %v511 = vmin.f32 %v463, %v489
  %v512 = vmin.f32 %v464, %v491
  %v513 = vmin.f32 %v465, %v493
  %v514 = vmin.f32 %v466, %v495
  %v515 = vmin.f32 %v467, %v497
  %v516 = vmin.f32 %v468, %v499
  %v517 = vmin.f32 %v469, %v501
  %vm518 = vcmask 7168
  %519 = vst.msk [vmem:[#allocation2] sm:$0xff] %vm518, %v502
  %520 = vst.msk [vmem:[#allocation2 + $0x8] sm:$0xff] %vm518, %v503
  %521 = vst.msk [vmem:[#allocation2 + $0x10] sm:$0xff] %vm518, %v504
  %522 = vst.msk [vmem:[#allocation2 + $0x18] sm:$0xff] %vm518, %v505
  %523 = vst.msk [vmem:[#allocation2 + $0x20] sm:$0xff] %vm518, %v506
  %524 = vst.msk [vmem:[#allocation2 + $0x28] sm:$0xff] %vm518, %v507
  %525 = vst.msk [vmem:[#allocation2 + $0x30] sm:$0xff] %vm518, %v508
  %526 = vst.msk [vmem:[#allocation2 + $0x38] sm:$0xff] %vm518, %v509
  %527 = vst.msk [vmem:[#allocation2 + $0x40] sm:$0xff] %vm518, %v510
  %528 = vst.msk [vmem:[#allocation2 + $0x48] sm:$0xff] %vm518, %v511
  %529 = vst.msk [vmem:[#allocation2 + $0x50] sm:$0xff] %vm518, %v512
  %530 = vst.msk [vmem:[#allocation2 + $0x58] sm:$0xff] %vm518, %v513
  %531 = vst.msk [vmem:[#allocation2 + $0x60] sm:$0xff] %vm518, %v514
  %532 = vst.msk [vmem:[#allocation2 + $0x68] sm:$0xff] %vm518, %v515
  %533 = vst.msk [vmem:[#allocation2 + $0x70] sm:$0xff] %vm518, %v516
  %534 = vst.msk [vmem:[#allocation2 + $0x78] sm:$0xff] %vm518, %v517
  // Predicated region
  $region30: #{tpu_custom_call.1} parent=0 // pred_check
    %p535 = pneg %p23
  $region31: #{tpu_custom_call.1} parent=0 // pred_check_branch
    %537 = sbr.rel (%p535) target = $region33
  $region32: #{tpu_custom_call.1} parent=0 // pred_region
    %v538 = vmul.f32 %v44, %v44
    %v539 = vmul.f32 %v45, %v45
    %v540 = vmul.f32 %v46, %v46
    %v541 = vmul.f32 %v47, %v47
    %v542 = vmul.f32 %v48, %v48
    %v543 = vmul.f32 %v49, %v49
    %v544 = vmul.f32 %v50, %v50
    %v545 = vmul.f32 %v51, %v51
    %v546 = vmul.f32 %v52, %v52
    %v547 = vmul.f32 %v53, %v53
    %v548 = vmul.f32 %v54, %v54
    %v549 = vmul.f32 %v55, %v55
    %v550 = vmul.f32 %v56, %v56
    %v551 = vmul.f32 %v57, %v57
    %v552 = vmul.f32 %v58, %v58
    %v553 = vmul.f32 %v59, %v59
    %v554 = vsel %vm87, %v538, 0.0
    %555 = vadd.xlane.f32.xlu0 %v554
    %v556 = vpop.xlane.xlu0 %555
    %v557 = vsel %vm87, %v539, 0.0
    %558 = vadd.xlane.f32.xlu0 %v557
    %v559 = vpop.xlane.xlu0 %558
    %v560 = vsel %vm87, %v540, 0.0
    %561 = vadd.xlane.f32.xlu0 %v560
    %v562 = vpop.xlane.xlu0 %561
    %v563 = vsel %vm87, %v541, 0.0
    %564 = vadd.xlane.f32.xlu0 %v563
    %v565 = vpop.xlane.xlu0 %564
    %v566 = vsel %vm87, %v542, 0.0
    %567 = vadd.xlane.f32.xlu0 %v566
    %v568 = vpop.xlane.xlu0 %567
    %v569 = vsel %vm87, %v543, 0.0
    %570 = vadd.xlane.f32.xlu0 %v569
    %v571 = vpop.xlane.xlu0 %570
    %v572 = vsel %vm87, %v544, 0.0
    %573 = vadd.xlane.f32.xlu0 %v572
    %v574 = vpop.xlane.xlu0 %573
    %v575 = vsel %vm87, %v545, 0.0
    %576 = vadd.xlane.f32.xlu0 %v575
    %v577 = vpop.xlane.xlu0 %576
    %v578 = vsel %vm87, %v546, 0.0
    %579 = vadd.xlane.f32.xlu0 %v578
    %v580 = vpop.xlane.xlu0 %579
    %v581 = vsel %vm87, %v547, 0.0
    %582 = vadd.xlane.f32.xlu0 %v581
    %v583 = vpop.xlane.xlu0 %582
    %v584 = vsel %vm87, %v548, 0.0
    %585 = vadd.xlane.f32.xlu0 %v584
    %v586 = vpop.xlane.xlu0 %585
    %v587 = vsel %vm87, %v549, 0.0
    %588 = vadd.xlane.f32.xlu0 %v587
    %v589 = vpop.xlane.xlu0 %588
    %v590 = vsel %vm87, %v550, 0.0
    %591 = vadd.xlane.f32.xlu0 %v590
    %v592 = vpop.xlane.xlu0 %591
    %v593 = vsel %vm87, %v551, 0.0
    %594 = vadd.xlane.f32.xlu0 %v593
    %v595 = vpop.xlane.xlu0 %594
    %v596 = vsel %vm87, %v552, 0.0
    %597 = vadd.xlane.f32.xlu0 %v596
    %v598 = vpop.xlane.xlu0 %597
    %v599 = vsel %vm87, %v553, 0.0
    %600 = vadd.xlane.f32.xlu0 %v599
    %v601 = vpop.xlane.xlu0 %600
    %v602 = vld [vmem:[#allocation2] sm:$0xff]
    %v603 = vld [vmem:[#allocation2 + $0x8] sm:$0xff]
    %v604 = vld [vmem:[#allocation2 + $0x10] sm:$0xff]
    %v605 = vld [vmem:[#allocation2 + $0x18] sm:$0xff]
    %v606 = vld [vmem:[#allocation2 + $0x20] sm:$0xff]
    %v607 = vld [vmem:[#allocation2 + $0x28] sm:$0xff]
    %v608 = vld [vmem:[#allocation2 + $0x30] sm:$0xff]
    %v609 = vld [vmem:[#allocation2 + $0x38] sm:$0xff]
    %v610 = vld [vmem:[#allocation2 + $0x40] sm:$0xff]
    %v611 = vld [vmem:[#allocation2 + $0x48] sm:$0xff]
    %v612 = vld [vmem:[#allocation2 + $0x50] sm:$0xff]
    %v613 = vld [vmem:[#allocation2 + $0x58] sm:$0xff]
    %v614 = vld [vmem:[#allocation2 + $0x60] sm:$0xff]
    %v615 = vld [vmem:[#allocation2 + $0x68] sm:$0xff]
    %v616 = vld [vmem:[#allocation2 + $0x70] sm:$0xff]
    %v617 = vld [vmem:[#allocation2 + $0x78] sm:$0xff]
    %v618 = vadd.f32 %v602, %v556
    %v619 = vadd.f32 %v603, %v559
    %v620 = vadd.f32 %v604, %v562
    %v621 = vadd.f32 %v605, %v565
    %v622 = vadd.f32 %v606, %v568
    %v623 = vadd.f32 %v607, %v571
    %v624 = vadd.f32 %v608, %v574
    %v625 = vadd.f32 %v609, %v577
    %v626 = vadd.f32 %v610, %v580
    %v627 = vadd.f32 %v611, %v583
    %v628 = vadd.f32 %v612, %v586
    %v629 = vadd.f32 %v613, %v589
    %v630 = vadd.f32 %v614, %v592
    %v631 = vadd.f32 %v615, %v595
    %v632 = vadd.f32 %v616, %v598
    %v633 = vadd.f32 %v617, %v601
    %v634 = vld [vmem:[%s1] sm:$0xff]
    %v635 = vld [vmem:[%s1 + $0x8] sm:$0xff]
    %v636 = vld [vmem:[%s1 + $0x10] sm:$0xff]
    %v637 = vld [vmem:[%s1 + $0x18] sm:$0xff]
    %v638 = vld [vmem:[%s1 + $0x20] sm:$0xff]
    %v639 = vld [vmem:[%s1 + $0x28] sm:$0xff]
    %v640 = vld [vmem:[%s1 + $0x30] sm:$0xff]
    %v641 = vld [vmem:[%s1 + $0x38] sm:$0xff]
    %v642 = vld [vmem:[%s1 + $0x40] sm:$0xff]
    %v643 = vld [vmem:[%s1 + $0x48] sm:$0xff]
    %v644 = vld [vmem:[%s1 + $0x50] sm:$0xff]
    %v645 = vld [vmem:[%s1 + $0x58] sm:$0xff]
    %v646 = vld [vmem:[%s1 + $0x60] sm:$0xff]
    %v647 = vld [vmem:[%s1 + $0x68] sm:$0xff]
    %v648 = vld [vmem:[%s1 + $0x70] sm:$0xff]
    %v649 = vld [vmem:[%s1 + $0x78] sm:$0xff]
    %v650 = vsub.f32 %v44, %v634
    %v651 = vsub.f32 %v45, %v635
    %v652 = vsub.f32 %v46, %v636
    %v653 = vsub.f32 %v47, %v637
    %v654 = vsub.f32 %v48, %v638
    %v655 = vsub.f32 %v49, %v639
    %v656 = vsub.f32 %v50, %v640
    %v657 = vsub.f32 %v51, %v641
    %v658 = vsub.f32 %v52, %v642
    %v659 = vsub.f32 %v53, %v643
    %v660 = vsub.f32 %v54, %v644
    %v661 = vsub.f32 %v55, %v645
    %v662 = vsub.f32 %v56, %v646
    %v663 = vsub.f32 %v57, %v647
    %v664 = vsub.f32 %v58, %v648
    %v665 = vsub.f32 %v59, %v649
    %v666 = vadd.f32 %v650, 1e-06
    %v667 = vadd.f32 %v651, 1e-06
    %v668 = vadd.f32 %v652, 1e-06
    %v669 = vadd.f32 %v653, 1e-06
    %v670 = vadd.f32 %v654, 1e-06
    %v671 = vadd.f32 %v655, 1e-06
    %v672 = vadd.f32 %v656, 1e-06
    %v673 = vadd.f32 %v657, 1e-06
    %v674 = vadd.f32 %v658, 1e-06
    %v675 = vadd.f32 %v659, 1e-06
    %v676 = vadd.f32 %v660, 1e-06
    %v677 = vadd.f32 %v661, 1e-06
    %v678 = vadd.f32 %v662, 1e-06
    %v679 = vadd.f32 %v663, 1e-06
    %v680 = vadd.f32 %v664, 1e-06
    %v681 = vadd.f32 %v665, 1e-06
    %v682 = vmul.f32 %v666, %v666
    %v683 = vmul.f32 %v667, %v667
    %v684 = vmul.f32 %v668, %v668
    %v685 = vmul.f32 %v669, %v669
    %v686 = vmul.f32 %v670, %v670
    %v687 = vmul.f32 %v671, %v671
    %v688 = vmul.f32 %v672, %v672
    %v689 = vmul.f32 %v673, %v673
    %v690 = vmul.f32 %v674, %v674
    %v691 = vmul.f32 %v675, %v675
    %v692 = vmul.f32 %v676, %v676
    %v693 = vmul.f32 %v677, %v677
    %v694 = vmul.f32 %v678, %v678
    %v695 = vmul.f32 %v679, %v679
    %v696 = vmul.f32 %v680, %v680
    %v697 = vmul.f32 %v681, %v681
    %v698 = vsel %vm87, %v682, 0.0
    %699 = vadd.xlane.f32.xlu0 %v698
    %v700 = vpop.xlane.xlu0 %699
    %v701 = vsel %vm87, %v683, 0.0
    %702 = vadd.xlane.f32.xlu0 %v701
    %v703 = vpop.xlane.xlu0 %702
    %v704 = vsel %vm87, %v684, 0.0
    %705 = vadd.xlane.f32.xlu0 %v704
    %v706 = vpop.xlane.xlu0 %705
    %v707 = vsel %vm87, %v685, 0.0
    %708 = vadd.xlane.f32.xlu0 %v707
    %v709 = vpop.xlane.xlu0 %708
    %v710 = vsel %vm87, %v686, 0.0
    %711 = vadd.xlane.f32.xlu0 %v710
    %v712 = vpop.xlane.xlu0 %711
    %v713 = vsel %vm87, %v687, 0.0
    %714 = vadd.xlane.f32.xlu0 %v713
    %v715 = vpop.xlane.xlu0 %714
    %v716 = vsel %vm87, %v688, 0.0
    %717 = vadd.xlane.f32.xlu0 %v716
    %v718 = vpop.xlane.xlu0 %717
    %v719 = vsel %vm87, %v689, 0.0
    %720 = vadd.xlane.f32.xlu0 %v719
    %v721 = vpop.xlane.xlu0 %720
    %v722 = vsel %vm87, %v690, 0.0
    %723 = vadd.xlane.f32.xlu0 %v722
    %v724 = vpop.xlane.xlu0 %723
    %v725 = vsel %vm87, %v691, 0.0
    %726 = vadd.xlane.f32.xlu0 %v725
    %v727 = vpop.xlane.xlu0 %726
    %v728 = vsel %vm87, %v692, 0.0
    %729 = vadd.xlane.f32.xlu0 %v728
    %v730 = vpop.xlane.xlu0 %729
    %v731 = vsel %vm87, %v693, 0.0
    %732 = vadd.xlane.f32.xlu0 %v731
    %v733 = vpop.xlane.xlu0 %732
    %v734 = vsel %vm87, %v694, 0.0
    %735 = vadd.xlane.f32.xlu0 %v734
    %v736 = vpop.xlane.xlu0 %735
    %v737 = vsel %vm87, %v695, 0.0
    %738 = vadd.xlane.f32.xlu0 %v737
    %v739 = vpop.xlane.xlu0 %738
    %v740 = vsel %vm87, %v696, 0.0
    %741 = vadd.xlane.f32.xlu0 %v740
    %v742 = vpop.xlane.xlu0 %741
    %v743 = vsel %vm87, %v697, 0.0
    %744 = vadd.xlane.f32.xlu0 %v743
    %v745 = vpop.xlane.xlu0 %744
    %v746 = vrsqrt.pop %v700
    %v747 = vmul.f32 %v700, %v746
    %vm748 = vcmp.eq.f32.partialorder %v700, inf
    %v749 = vsel %vm748, %v700, %v747
    %vm750 = vcmp.eq.f32.partialorder %v700, 0.0
    %v751 = vand.u32 %v700, 2147483648
    %v752 = vsel %vm750, %v751, %v749
    %v753 = vrsqrt.pop %v703
    %v754 = vmul.f32 %v703, %v753
    %vm755 = vcmp.eq.f32.partialorder %v703, inf
    %v756 = vsel %vm755, %v703, %v754
    %vm757 = vcmp.eq.f32.partialorder %v703, 0.0
    %v758 = vand.u32 %v703, 2147483648
    %v759 = vsel %vm757, %v758, %v756
    %v760 = vrsqrt.pop %v706
    %v761 = vmul.f32 %v706, %v760
    %vm762 = vcmp.eq.f32.partialorder %v706, inf
    %v763 = vsel %vm762, %v706, %v761
    %vm764 = vcmp.eq.f32.partialorder %v706, 0.0
    %v765 = vand.u32 %v706, 2147483648
    %v766 = vsel %vm764, %v765, %v763
    %v767 = vrsqrt.pop %v709
    %v768 = vmul.f32 %v709, %v767
    %vm769 = vcmp.eq.f32.partialorder %v709, inf
    %v770 = vsel %vm769, %v709, %v768
    %vm771 = vcmp.eq.f32.partialorder %v709, 0.0
    %v772 = vand.u32 %v709, 2147483648
    %v773 = vsel %vm771, %v772, %v770
    %v774 = vrsqrt.pop %v712
    %v775 = vmul.f32 %v712, %v774
    %vm776 = vcmp.eq.f32.partialorder %v712, inf
    %v777 = vsel %vm776, %v712, %v775
    %vm778 = vcmp.eq.f32.partialorder %v712, 0.0
    %v779 = vand.u32 %v712, 2147483648
    %v780 = vsel %vm778, %v779, %v777
    %v781 = vrsqrt.pop %v715
    %v782 = vmul.f32 %v715, %v781
    %vm783 = vcmp.eq.f32.partialorder %v715, inf
    %v784 = vsel %vm783, %v715, %v782
    %vm785 = vcmp.eq.f32.partialorder %v715, 0.0
    %v786 = vand.u32 %v715, 2147483648
    %v787 = vsel %vm785, %v786, %v784
    %v788 = vrsqrt.pop %v718
    %v789 = vmul.f32 %v718, %v788
    %vm790 = vcmp.eq.f32.partialorder %v718, inf
    %v791 = vsel %vm790, %v718, %v789
    %vm792 = vcmp.eq.f32.partialorder %v718, 0.0
    %v793 = vand.u32 %v718, 2147483648
    %v794 = vsel %vm792, %v793, %v791
    %v795 = vrsqrt.pop %v721
    %v796 = vmul.f32 %v721, %v795
    %vm797 = vcmp.eq.f32.partialorder %v721, inf
    %v798 = vsel %vm797, %v721, %v796
    %vm799 = vcmp.eq.f32.partialorder %v721, 0.0
    %v800 = vand.u32 %v721, 2147483648
    %v801 = vsel %vm799, %v800, %v798
    %v802 = vrsqrt.pop %v724
    %v803 = vmul.f32 %v724, %v802
    %vm804 = vcmp.eq.f32.partialorder %v724, inf
    %v805 = vsel %vm804, %v724, %v803
    %vm806 = vcmp.eq.f32.partialorder %v724, 0.0
    %v807 = vand.u32 %v724, 2147483648
    %v808 = vsel %vm806, %v807, %v805
    %v809 = vrsqrt.pop %v727
    %v810 = vmul.f32 %v727, %v809
    %vm811 = vcmp.eq.f32.partialorder %v727, inf
    %v812 = vsel %vm811, %v727, %v810
    %vm813 = vcmp.eq.f32.partialorder %v727, 0.0
    %v814 = vand.u32 %v727, 2147483648
    %v815 = vsel %vm813, %v814, %v812
    %v816 = vrsqrt.pop %v730
    %v817 = vmul.f32 %v730, %v816
    %vm818 = vcmp.eq.f32.partialorder %v730, inf
    %v819 = vsel %vm818, %v730, %v817
    %vm820 = vcmp.eq.f32.partialorder %v730, 0.0
    %v821 = vand.u32 %v730, 2147483648
    %v822 = vsel %vm820, %v821, %v819
    %v823 = vrsqrt.pop %v733
    %v824 = vmul.f32 %v733, %v823
    %vm825 = vcmp.eq.f32.partialorder %v733, inf
    %v826 = vsel %vm825, %v733, %v824
    %vm827 = vcmp.eq.f32.partialorder %v733, 0.0
    %v828 = vand.u32 %v733, 2147483648
    %v829 = vsel %vm827, %v828, %v826
    %v830 = vrsqrt.pop %v736
    %v831 = vmul.f32 %v736, %v830
    %vm832 = vcmp.eq.f32.partialorder %v736, inf
    %v833 = vsel %vm832, %v736, %v831
    %vm834 = vcmp.eq.f32.partialorder %v736, 0.0
    %v835 = vand.u32 %v736, 2147483648
    %v836 = vsel %vm834, %v835, %v833
    %v837 = vrsqrt.pop %v739
    %v838 = vmul.f32 %v739, %v837
    %vm839 = vcmp.eq.f32.partialorder %v739, inf
    %v840 = vsel %vm839, %v739, %v838
    %vm841 = vcmp.eq.f32.partialorder %v739, 0.0
    %v842 = vand.u32 %v739, 2147483648
    %v843 = vsel %vm841, %v842, %v840
    %v844 = vrsqrt.pop %v742
    %v845 = vmul.f32 %v742, %v844
    %vm846 = vcmp.eq.f32.partialorder %v742, inf
    %v847 = vsel %vm846, %v742, %v845
    %vm848 = vcmp.eq.f32.partialorder %v742, 0.0
    %v849 = vand.u32 %v742, 2147483648
    %v850 = vsel %vm848, %v849, %v847
    %v851 = vrsqrt.pop %v745
    %v852 = vmul.f32 %v745, %v851
    %vm853 = vcmp.eq.f32.partialorder %v745, inf
    %v854 = vsel %vm853, %v745, %v852
    %vm855 = vcmp.eq.f32.partialorder %v745, 0.0
    %v856 = vand.u32 %v745, 2147483648
    %v857 = vsel %vm855, %v856, %v854
    %vm858 = vcmp.gt.f32.partialorder %v618, 100000.0
    %vm859 = vcmp.gt.f32.partialorder %v619, 100000.0
    %vm860 = vcmp.gt.f32.partialorder %v620, 100000.0
    %vm861 = vcmp.gt.f32.partialorder %v621, 100000.0
    %vm862 = vcmp.gt.f32.partialorder %v622, 100000.0
    %vm863 = vcmp.gt.f32.partialorder %v623, 100000.0
    %vm864 = vcmp.gt.f32.partialorder %v624, 100000.0
    %vm865 = vcmp.gt.f32.partialorder %v625, 100000.0
    %vm866 = vcmp.gt.f32.partialorder %v626, 100000.0
    %vm867 = vcmp.gt.f32.partialorder %v627, 100000.0
    %vm868 = vcmp.gt.f32.partialorder %v628, 100000.0
    %vm869 = vcmp.gt.f32.partialorder %v629, 100000.0
    %vm870 = vcmp.gt.f32.partialorder %v630, 100000.0
    %vm871 = vcmp.gt.f32.partialorder %v631, 100000.0
    %vm872 = vcmp.gt.f32.partialorder %v632, 100000.0
    %vm873 = vcmp.gt.f32.partialorder %v633, 100000.0
    %v874 = vmax.f32 %v618, 0.0
    %v875 = vmax.f32 %v619, 0.0
    %v876 = vmax.f32 %v620, 0.0
    %v877 = vmax.f32 %v621, 0.0
    %v878 = vmax.f32 %v622, 0.0
    %v879 = vmax.f32 %v623, 0.0
    %v880 = vmax.f32 %v624, 0.0
    %v881 = vmax.f32 %v625, 0.0
    %v882 = vmax.f32 %v626, 0.0
    %v883 = vmax.f32 %v627, 0.0
    %v884 = vmax.f32 %v628, 0.0
    %v885 = vmax.f32 %v629, 0.0
    %v886 = vmax.f32 %v630, 0.0
    %v887 = vmax.f32 %v631, 0.0
    %v888 = vmax.f32 %v632, 0.0
    %v889 = vmax.f32 %v633, 0.0
    %v890 = vrsqrt.pop %v874
    %v891 = vmul.f32 %v874, %v890
    %vm892 = vcmp.eq.f32.partialorder %v874, inf
    %v893 = vsel %vm892, %v874, %v891
    %vm894 = vcmp.eq.f32.partialorder %v874, 0.0
    %v895 = vand.u32 %v874, 2147483648
    %v896 = vsel %vm894, %v895, %v893
    %v897 = vrsqrt.pop %v875
    %v898 = vmul.f32 %v875, %v897
    %vm899 = vcmp.eq.f32.partialorder %v875, inf
    %v900 = vsel %vm899, %v875, %v898
    %vm901 = vcmp.eq.f32.partialorder %v875, 0.0
    %v902 = vand.u32 %v875, 2147483648
    %v903 = vsel %vm901, %v902, %v900
    %v904 = vrsqrt.pop %v876
    %v905 = vmul.f32 %v876, %v904
    %vm906 = vcmp.eq.f32.partialorder %v876, inf
    %v907 = vsel %vm906, %v876, %v905
    %vm908 = vcmp.eq.f32.partialorder %v876, 0.0
    %v909 = vand.u32 %v876, 2147483648
    %v910 = vsel %vm908, %v909, %v907
    %v911 = vrsqrt.pop %v877
    %v912 = vmul.f32 %v877, %v911
    %vm913 = vcmp.eq.f32.partialorder %v877, inf
    %v914 = vsel %vm913, %v877, %v912
    %vm915 = vcmp.eq.f32.partialorder %v877, 0.0
    %v916 = vand.u32 %v877, 2147483648
    %v917 = vsel %vm915, %v916, %v914
    %v918 = vrsqrt.pop %v878
    %v919 = vmul.f32 %v878, %v918
    %vm920 = vcmp.eq.f32.partialorder %v878, inf
    %v921 = vsel %vm920, %v878, %v919
    %vm922 = vcmp.eq.f32.partialorder %v878, 0.0
    %v923 = vand.u32 %v878, 2147483648
    %v924 = vsel %vm922, %v923, %v921
    %v925 = vrsqrt.pop %v879
    %v926 = vmul.f32 %v879, %v925
    %vm927 = vcmp.eq.f32.partialorder %v879, inf
    %v928 = vsel %vm927, %v879, %v926
    %vm929 = vcmp.eq.f32.partialorder %v879, 0.0
    %v930 = vand.u32 %v879, 2147483648
    %v931 = vsel %vm929, %v930, %v928
    %v932 = vrsqrt.pop %v880
    %v933 = vmul.f32 %v880, %v932
    %vm934 = vcmp.eq.f32.partialorder %v880, inf
    %v935 = vsel %vm934, %v880, %v933
    %vm936 = vcmp.eq.f32.partialorder %v880, 0.0
    %v937 = vand.u32 %v880, 2147483648
    %v938 = vsel %vm936, %v937, %v935
    %v939 = vrsqrt.pop %v881
    %v940 = vmul.f32 %v881, %v939
    %vm941 = vcmp.eq.f32.partialorder %v881, inf
    %v942 = vsel %vm941, %v881, %v940
    %vm943 = vcmp.eq.f32.partialorder %v881, 0.0
    %v944 = vand.u32 %v881, 2147483648
    %v945 = vsel %vm943, %v944, %v942
    %v946 = vrsqrt.pop %v882
    %v947 = vmul.f32 %v882, %v946
    %vm948 = vcmp.eq.f32.partialorder %v882, inf
    %v949 = vsel %vm948, %v882, %v947
    %vm950 = vcmp.eq.f32.partialorder %v882, 0.0
    %v951 = vand.u32 %v882, 2147483648
    %v952 = vsel %vm950, %v951, %v949
    %v953 = vrsqrt.pop %v883
    %v954 = vmul.f32 %v883, %v953
    %vm955 = vcmp.eq.f32.partialorder %v883, inf
    %v956 = vsel %vm955, %v883, %v954
    %vm957 = vcmp.eq.f32.partialorder %v883, 0.0
    %v958 = vand.u32 %v883, 2147483648
    %v959 = vsel %vm957, %v958, %v956
    %v960 = vrsqrt.pop %v884
    %v961 = vmul.f32 %v884, %v960
    %vm962 = vcmp.eq.f32.partialorder %v884, inf
    %v963 = vsel %vm962, %v884, %v961
    %vm964 = vcmp.eq.f32.partialorder %v884, 0.0
    %v965 = vand.u32 %v884, 2147483648
    %v966 = vsel %vm964, %v965, %v963
    %v967 = vrsqrt.pop %v885
    %v968 = vmul.f32 %v885, %v967
    %vm969 = vcmp.eq.f32.partialorder %v885, inf
    %v970 = vsel %vm969, %v885, %v968
    %vm971 = vcmp.eq.f32.partialorder %v885, 0.0
    %v972 = vand.u32 %v885, 2147483648
    %v973 = vsel %vm971, %v972, %v970
    %v974 = vrsqrt.pop %v886
    %v975 = vmul.f32 %v886, %v974
    %vm976 = vcmp.eq.f32.partialorder %v886, inf
    %v977 = vsel %vm976, %v886, %v975
    %vm978 = vcmp.eq.f32.partialorder %v886, 0.0
    %v979 = vand.u32 %v886, 2147483648
    %v980 = vsel %vm978, %v979, %v977
    %v981 = vrsqrt.pop %v887
    %v982 = vmul.f32 %v887, %v981
    %vm983 = vcmp.eq.f32.partialorder %v887, inf
    %v984 = vsel %vm983, %v887, %v982
    %vm985 = vcmp.eq.f32.partialorder %v887, 0.0
    %v986 = vand.u32 %v887, 2147483648
    %v987 = vsel %vm985, %v986, %v984
    %v988 = vrsqrt.pop %v888
    %v989 = vmul.f32 %v888, %v988
    %vm990 = vcmp.eq.f32.partialorder %v888, inf
    %v991 = vsel %vm990, %v888, %v989
    %vm992 = vcmp.eq.f32.partialorder %v888, 0.0
    %v993 = vand.u32 %v888, 2147483648
    %v994 = vsel %vm992, %v993, %v991
    %v995 = vrsqrt.pop %v889
    %v996 = vmul.f32 %v889, %v995
    %vm997 = vcmp.eq.f32.partialorder %v889, inf
    %v998 = vsel %vm997, %v889, %v996
    %vm999 = vcmp.eq.f32.partialorder %v889, 0.0
    %v1000 = vand.u32 %v889, 2147483648
    %v1001 = vsel %vm999, %v1000, %v998
    %v1002 = vsel %vm858, %v752, %v896
    %v1003 = vsel %vm859, %v759, %v903
    %v1004 = vsel %vm860, %v766, %v910
    %v1005 = vsel %vm861, %v773, %v917
    %v1006 = vsel %vm862, %v780, %v924
    %v1007 = vsel %vm863, %v787, %v931
    %v1008 = vsel %vm864, %v794, %v938
    %v1009 = vsel %vm865, %v801, %v945
    %v1010 = vsel %vm866, %v808, %v952
    %v1011 = vsel %vm867, %v815, %v959
    %v1012 = vsel %vm868, %v822, %v966
    %v1013 = vsel %vm869, %v829, %v973
    %v1014 = vsel %vm870, %v836, %v980
    %v1015 = vsel %vm871, %v843, %v987
    %v1016 = vsel %vm872, %v850, %v994
    %v1017 = vsel %vm873, %v857, %v1001
    %v1018 = vsub.f32 %v752, %v1002
    %v1019 = vsub.f32 %v759, %v1003
    %v1020 = vsub.f32 %v766, %v1004
    %v1021 = vsub.f32 %v773, %v1005
    %v1022 = vsub.f32 %v780, %v1006
    %v1023 = vsub.f32 %v787, %v1007
    %v1024 = vsub.f32 %v794, %v1008
    %v1025 = vsub.f32 %v801, %v1009
    %v1026 = vsub.f32 %v808, %v1010
    %v1027 = vsub.f32 %v815, %v1011
    %v1028 = vsub.f32 %v822, %v1012
    %v1029 = vsub.f32 %v829, %v1013
    %v1030 = vsub.f32 %v836, %v1014
    %v1031 = vsub.f32 %v843, %v1015
    %v1032 = vsub.f32 %v850, %v1016
    %v1033 = vsub.f32 %v857, %v1017
    %v1034 = vadd.f32 %v1018, 1.0
    %v1035 = vadd.f32 %v1019, 1.0
    %v1036 = vadd.f32 %v1020, 1.0
    %v1037 = vadd.f32 %v1021, 1.0
    %v1038 = vadd.f32 %v1022, 1.0
    %v1039 = vadd.f32 %v1023, 1.0
    %v1040 = vadd.f32 %v1024, 1.0
    %v1041 = vadd.f32 %v1025, 1.0
    %v1042 = vadd.f32 %v1026, 1.0
    %v1043 = vadd.f32 %v1027, 1.0
    %v1044 = vadd.f32 %v1028, 1.0
    %v1045 = vadd.f32 %v1029, 1.0
    %v1046 = vadd.f32 %v1030, 1.0
    %v1047 = vadd.f32 %v1031, 1.0
    %v1048 = vadd.f32 %v1032, 1.0
    %v1049 = vadd.f32 %v1033, 1.0
    %v1050 = vmax.f32 %v1034, 0.0
    %v1051 = vmax.f32 %v1035, 0.0
    %v1052 = vmax.f32 %v1036, 0.0
    %v1053 = vmax.f32 %v1037, 0.0
    %v1054 = vmax.f32 %v1038, 0.0
    %v1055 = vmax.f32 %v1039, 0.0
    %v1056 = vmax.f32 %v1040, 0.0
    %v1057 = vmax.f32 %v1041, 0.0
    %v1058 = vmax.f32 %v1042, 0.0
    %v1059 = vmax.f32 %v1043, 0.0
    %v1060 = vmax.f32 %v1044, 0.0
    %v1061 = vmax.f32 %v1045, 0.0
    %v1062 = vmax.f32 %v1046, 0.0
    %v1063 = vmax.f32 %v1047, 0.0
    %v1064 = vmax.f32 %v1048, 0.0
    %v1065 = vmax.f32 %v1049, 0.0
    %vm1066 = vcmp.lt.s32.totalorder %v300, 24
    %vm1067 = vcmp.lt.s32.totalorder %v301, 24
    %vm1068 = vcmp.lt.s32.totalorder %v302, 24
    %vm1069 = vcmp.lt.s32.totalorder %v303, 24
    %vm1070 = vcmp.lt.s32.totalorder %v304, 24
    %vm1071 = vcmp.lt.s32.totalorder %v305, 24
    %vm1072 = vcmp.lt.s32.totalorder %v306, 24
    %vm1073 = vcmp.lt.s32.totalorder %v307, 24
    %vm1074 = vcmp.lt.s32.totalorder %v308, 24
    %vm1075 = vcmp.lt.s32.totalorder %v309, 24
    %vm1076 = vcmp.lt.s32.totalorder %v310, 24
    %vm1077 = vcmp.lt.s32.totalorder %v311, 24
    %vm1078 = vcmp.lt.s32.totalorder %v312, 24
    %vm1079 = vcmp.lt.s32.totalorder %v313, 24
    %vm1080 = vcmp.lt.s32.totalorder %v314, 24
    %vm1081 = vcmp.lt.s32.totalorder %v315, 24
    %v1082 = vsel %vm1066, %v1050, 0.0
    %v1083 = vsel %vm1067, %v1051, 0.0
    %v1084 = vsel %vm1068, %v1052, 0.0
    %v1085 = vsel %vm1069, %v1053, 0.0
    %v1086 = vsel %vm1070, %v1054, 0.0
    %v1087 = vsel %vm1071, %v1055, 0.0
    %v1088 = vsel %vm1072, %v1056, 0.0
    %v1089 = vsel %vm1073, %v1057, 0.0
    %v1090 = vsel %vm1074, %v1058, 0.0
    %v1091 = vsel %vm1075, %v1059, 0.0
    %v1092 = vsel %vm1076, %v1060, 0.0
    %v1093 = vsel %vm1077, %v1061, 0.0
    %v1094 = vsel %vm1078, %v1062, 0.0
    %v1095 = vsel %vm1079, %v1063, 0.0
    %v1096 = vsel %vm1080, %v1064, 0.0
    %v1097 = vsel %vm1081, %v1065, 0.0
    %1098 = vst.msk [vmem:[%s6] sm:$0xff] %vm518, %v1082
    %1099 = vst.msk [vmem:[%s6 + $0x8] sm:$0xff] %vm518, %v1083
    %1100 = vst.msk [vmem:[%s6 + $0x10] sm:$0xff] %vm518, %v1084
    %1101 = vst.msk [vmem:[%s6 + $0x18] sm:$0xff] %vm518, %v1085
    %1102 = vst.msk [vmem:[%s6 + $0x20] sm:$0xff] %vm518, %v1086
    %1103 = vst.msk [vmem:[%s6 + $0x28] sm:$0xff] %vm518, %v1087
    %1104 = vst.msk [vmem:[%s6 + $0x30] sm:$0xff] %vm518, %v1088
    %1105 = vst.msk [vmem:[%s6 + $0x38] sm:$0xff] %vm518, %v1089
    %1106 = vst.msk [vmem:[%s6 + $0x40] sm:$0xff] %vm518, %v1090
    %1107 = vst.msk [vmem:[%s6 + $0x48] sm:$0xff] %vm518, %v1091
    %1108 = vst.msk [vmem:[%s6 + $0x50] sm:$0xff] %vm518, %v1092
    %1109 = vst.msk [vmem:[%s6 + $0x58] sm:$0xff] %vm518, %v1093
    %1110 = vst.msk [vmem:[%s6 + $0x60] sm:$0xff] %vm518, %v1094
    %1111 = vst.msk [vmem:[%s6 + $0x68] sm:$0xff] %vm518, %v1095
    %1112 = vst.msk [vmem:[%s6 + $0x70] sm:$0xff] %vm518, %v1096
    %1113 = vst.msk [vmem:[%s6 + $0x78] sm:$0xff] %vm518, %v1097
  $region33: #{tpu_custom_call.1} parent=0 // pred_fallthru
    _
  // Predicated region
  $region34: #{tpu_custom_call.1} parent=0 // pred_check
    _
  $region35: #{tpu_custom_call.1} parent=0 // pred_check_branch
    %1115 = sbr.rel (0) target = $region37
  $region36: #{tpu_custom_call.1} parent=0 // pred_region
    _
  $region37: #{tpu_custom_call.1} parent=0 // pred_fallthru
    _
  // Predicated region
  $region38: #{tpu_custom_call.1} parent=0 // pred_check
    _
  $region39: #{tpu_custom_call.1} parent=0 // pred_check_branch
    %1117 = sbr.rel (0) target = $region41
  $region40: #{tpu_custom_call.1} parent=0 // pred_region
    _
  $region41: #{tpu_custom_call.1} parent=0 // pred_fallthru
    _

</llo_original>
